<compile_context>
chip_gen: v7x
topology: tpu7x:2x2x1
jax: 0.10.0
libtpu: 0.0.40
codegen_flags: <defaults>
</compile_context>

<pallas_src>
import jax
import jax.numpy as jnp
from jax.experimental import pallas as pl
from jax.experimental.pallas import tpu as pltpu

BN_EPS = 1e-3
LANE = 128


def _round_up(x, m):
    return (x + m - 1) // m * m


def _make_kernel(p_real):
    inv_p = 1.0 / float(p_real)

    def kernel(x_ref, w_ref, gamma_ref, beta_ref, o_ref):
        # x_ref:    (Cin, Pp)  bf16, resident across the Cout grid (index_map -> (0,0))
        # w_ref:    (TC, Cin)  bf16 tile of the padded weight
        # gamma/beta: (TC, 1)  f32
        # o_ref:    (TC, Pp)   f32
        y = jnp.dot(w_ref[...], x_ref[...], preferred_element_type=jnp.float32)

        # Padded P columns of x are zero -> they contribute nothing to either
        # sum, so dividing by the *real* P gives the exact biased batch stats
        # (what BatchNorm2d uses for the normalization itself).
        s1 = jnp.sum(y, axis=1, keepdims=True)
        s2 = jnp.sum(y * y, axis=1, keepdims=True)
        mean = s1 * inv_p
        var = s2 * inv_p - mean * mean
        inv_std = jax.lax.rsqrt(var + BN_EPS)

        # Fold BN into a single FMA per element.
        scale = gamma_ref[...] * inv_std
        shift = beta_ref[...] - mean * scale
        o_ref[...] = (y * scale + shift).astype(o_ref.dtype)

    return kernel


def conv1x1_bn(x_nchw, weight, gamma, beta, *, tile_cout=128):
    """x_nchw: (N, Cin, H, W); weight: (Cout, Cin, 1, 1); gamma/beta: (Cout,)."""
    n, cin, h, w = x_nchw.shape
    cout = weight.shape[0]
    p = n * h * w

    # NCHW -> (Cin, P).  For N == 1 this is a pure reshape (no transpose).
    if n == 1:
        x2d = x_nchw.reshape(cin, p)
    else:
        x2d = jnp.transpose(x_nchw, (1, 0, 2, 3)).reshape(cin, p)

    w2d = weight.reshape(cout, cin)

    # Pad lane-minor output dim (P) to a multiple of 128 (unmasked vst) and
    # Cout to a multiple of the tile so the grid divides evenly.
    p_pad = _round_up(p, LANE)
    cout_pad = _round_up(cout, tile_cout)

    x2d = jnp.pad(x2d, ((0, 0), (0, p_pad - p))).astype(jnp.bfloat16)
    w2d = jnp.pad(w2d, ((0, cout_pad - cout), (0, 0))).astype(jnp.bfloat16)
    gamma2d = jnp.pad(gamma.astype(jnp.float32), (0, cout_pad - cout),
                      constant_values=1.0).reshape(cout_pad, 1)
    beta2d = jnp.pad(beta.astype(jnp.float32),
                     (0, cout_pad - cout)).reshape(cout_pad, 1)

    grid = (cout_pad // tile_cout,)

    cost = pl.CostEstimate(
        flops=2 * p * cin * cout,
        transcendentals=cout,
        bytes_accessed=(x2d.size * 2 + w2d.size * 2
                        + gamma2d.size * 4 + beta2d.size * 4
                        + cout_pad * p_pad * 4),
    )

    out_pad = pl.pallas_call(
        _make_kernel(p),
        out_shape=jax.ShapeDtypeStruct((cout_pad, p_pad), jnp.float32),
        grid_spec=pltpu.PrefetchScalarGridSpec(
            num_scalar_prefetch=0,
            grid=grid,
            in_specs=[
                pl.BlockSpec((cin, p_pad), lambda i: (0, 0)),      # x (resident)
                pl.BlockSpec((tile_cout, cin), lambda i: (i, 0)),  # W tile
                pl.BlockSpec((tile_cout, 1), lambda i: (i, 0)),    # gamma
                pl.BlockSpec((tile_cout, 1), lambda i: (i, 0)),    # beta
            ],
            out_specs=pl.BlockSpec((tile_cout, p_pad), lambda i: (i, 0)),
        ),
        compiler_params=pltpu.CompilerParams(
            dimension_semantics=("parallel",),
        ),
        cost_estimate=cost,
    )(x2d, w2d, gamma2d, beta2d)

    out = out_pad[:cout, :p]
    if n == 1:
        return out.reshape(1, cout, h, w)
    return jnp.transpose(out.reshape(cout, n, h, w), (1, 0, 2, 3))


if __name__ == "__main__":
    # Shapes implied by the module: x in (1, 176, 14, 14), conv 176 -> 1056, bias=False.
    N, CIN, H, W = 1, 176, 14, 14
    COUT = 1056

    key = jax.random.PRNGKey(0)
    kx, kw = jax.random.split(key)
    x = jax.random.normal(kx, (N, CIN, H, W), dtype=jnp.float32)
    conv_w = jax.random.normal(kw, (COUT, CIN, 1, 1), dtype=jnp.float32) * 0.05
    bn_gamma = jnp.ones((COUT,), dtype=jnp.float32)   # PyTorch-default BN affine params
    bn_beta = jnp.zeros((COUT,), dtype=jnp.float32)

    # TODO(synk): BatchNorm2d training-mode running_mean/running_var buffer updates
    # are not produced (only the normalized forward output, as the module returns).
    out = conv1x1_bn(x, conv_w, bn_gamma, bn_beta)
    out = jax.block_until_ready(out)
    assert out.shape == (N, COUT, H, W), out.shape
    assert bool(jnp.all(jnp.isfinite(out)))
    print("KERNEL_OK")
</pallas_src>

<mosaic_0001>
module attributes {stable_mosaic.version = 11 : i64} {
  func.func @kernel(%arg0: i32, %arg1: memref<176x256xbf16, #tpu.memory_space<vmem>>, %arg2: memref<128x176xbf16, #tpu.memory_space<vmem>>, %arg3: memref<128x1xf32, #tpu.memory_space<vmem>>, %arg4: memref<128x1xf32, #tpu.memory_space<vmem>>, %arg5: memref<128x256xf32, #tpu.memory_space<vmem>>) attributes {dimension_semantics = [#tpu.dimension_semantics<parallel>], iteration_bounds = array<i64: 9>, scalar_prefetch = 0 : i64, scratch_operands = 0 : i64, tpu.core_type = #tpu.core_type<tc>, window_params = [{pipeline_mode = #tpu.pipeline_mode<synchronous>, transform_indices = @transform_0, window_bounds = array<i64: 176, 256>}, {transform_indices = @transform_1, window_bounds = array<i64: 128, 176>}, {transform_indices = @transform_2, window_bounds = array<i64: 128, 1>}, {transform_indices = @transform_3, window_bounds = array<i64: 128, 1>}, {transform_indices = @transform_4, window_bounds = array<i64: 128, 256>}]} {
    %c0 = arith.constant 0 : index
    %c0_0 = arith.constant 0 : index
    %0 = vector.load %arg2[%c0, %c0_0] : memref<128x176xbf16, #tpu.memory_space<vmem>>, vector<128x176xbf16>
    %c0_1 = arith.constant 0 : index
    %c0_2 = arith.constant 0 : index
    %1 = vector.load %arg1[%c0_1, %c0_2] : memref<176x256xbf16, #tpu.memory_space<vmem>>, vector<176x256xbf16>
    %cst = arith.constant dense<0.000000e+00> : vector<128x256xf32>
    %2 = tpu.matmul %0, %1, %cst {dimension_numbers = #tpu.dot_dimension_numbers<[1], [0], [0], [1], [0, 0, 1, 1], [], []>} : vector<128x176xbf16>, vector<176x256xbf16>, vector<128x256xf32> -> vector<128x256xf32>
    %cst_3 = arith.constant dense<0.000000e+00> : vector<128xf32>
    %3 = vector.multi_reduction <add>, %2, %cst_3 [1] : vector<128x256xf32> to vector<128xf32>
    %4 = vector.shape_cast %3 : vector<128xf32> to vector<128x1xf32>
    %5 = arith.mulf %2, %2 : vector<128x256xf32>
    %cst_4 = arith.constant dense<0.000000e+00> : vector<128xf32>
    %6 = vector.multi_reduction <add>, %5, %cst_4 [1] : vector<128x256xf32> to vector<128xf32>
    %7 = vector.shape_cast %6 : vector<128xf32> to vector<128x1xf32>
    %cst_5 = arith.constant 0.00510204071 : f32
    %8 = vector.broadcast %cst_5 : f32 to vector<128x1xf32>
    %9 = arith.mulf %4, %8 : vector<128x1xf32>
    %cst_6 = arith.constant 0.00510204071 : f32
    %10 = vector.broadcast %cst_6 : f32 to vector<128x1xf32>
    %11 = arith.mulf %7, %10 : vector<128x1xf32>
    %12 = arith.mulf %9, %9 : vector<128x1xf32>
    %13 = arith.subf %11, %12 : vector<128x1xf32>
    %cst_7 = arith.constant 1.000000e-03 : f32
    %14 = vector.broadcast %cst_7 : f32 to vector<128x1xf32>
    %15 = arith.addf %13, %14 : vector<128x1xf32>
    %16 = math.rsqrt %15 : vector<128x1xf32>
    %c0_8 = arith.constant 0 : index
    %c0_9 = arith.constant 0 : index
    %17 = vector.load %arg3[%c0_8, %c0_9] : memref<128x1xf32, #tpu.memory_space<vmem>>, vector<128x1xf32>
    %18 = arith.mulf %17, %16 : vector<128x1xf32>
    %c0_10 = arith.constant 0 : index
    %c0_11 = arith.constant 0 : index
    %19 = vector.load %arg4[%c0_10, %c0_11] : memref<128x1xf32, #tpu.memory_space<vmem>>, vector<128x1xf32>
    %20 = arith.mulf %9, %18 : vector<128x1xf32>
    %21 = arith.subf %19, %20 : vector<128x1xf32>
    %22 = vector.broadcast %18 : vector<128x1xf32> to vector<128x256xf32>
    %23 = arith.mulf %2, %22 : vector<128x256xf32>
    %24 = vector.broadcast %21 : vector<128x1xf32> to vector<128x256xf32>
    %25 = arith.addf %23, %24 : vector<128x256xf32>
    %c0_12 = arith.constant 0 : index
    %c0_13 = arith.constant 0 : index
    %26 = vector.load %arg5[%c0_12, %c0_13] : memref<128x256xf32, #tpu.memory_space<vmem>>, vector<128x256xf32>
    tpu.vector_store %arg5[%c0_12, %c0_13], %25 {strides = array<i32>} : memref<128x256xf32, #tpu.memory_space<vmem>>, vector<128x256xf32>,
    return
  }
  func.func @transform_0(%arg0: i32) -> (i32, i32) {
    %c0_i32 = arith.constant 0 : i32
    %c0_i32_0 = arith.constant 0 : i32
    %c0_i32_1 = arith.constant 0 : i32
    return %c0_i32, %c0_i32_0 : i32, i32
  }
  func.func @transform_1(%arg0: i32) -> (i32, i32) {
    %c0_i32 = arith.constant 0 : i32
    %c0_i32_0 = arith.constant 0 : i32
    return %arg0, %c0_i32 : i32, i32
  }
  func.func @transform_2(%arg0: i32) -> (i32, i32) {
    %c0_i32 = arith.constant 0 : i32
    %c0_i32_0 = arith.constant 0 : i32
    return %arg0, %c0_i32 : i32, i32
  }
  func.func @transform_3(%arg0: i32) -> (i32, i32) {
    %c0_i32 = arith.constant 0 : i32
    %c0_i32_0 = arith.constant 0 : i32
    return %arg0, %c0_i32 : i32, i32
  }
  func.func @transform_4(%arg0: i32) -> (i32, i32) {
    %c0_i32 = arith.constant 0 : i32
    %c0_i32_0 = arith.constant 0 : i32
    return %arg0, %c0_i32 : i32, i32
  }
}

</mosaic_0001>

<llo_original>
// kernel: tpu_custom_call.1
$region0: #{tpu_custom_call.1}
  #allocation0 [shape = 'u32[]', space=smem, size = 0x4, offset = 0x4, fixed_abs, tag = 'smem constant byte address 0x4 - core index']
  #allocation1 [shape = 'u32[144,128]{1,0:T(1,128)}', space=vmem, size = 0x12000, scoped, tag = 'internal scratch']
  %s0 = inlined_call_operand.vmem [shape: bf16[176,256], index: 0, kind: input, shape index: {}]
  %s1 = inlined_call_operand.vmem [shape: bf16[1152,176], index: 1, kind: input, shape index: {}]
  %s2 = inlined_call_operand.vmem [shape: f32[1152,1], index: 2, kind: input, shape index: {}]
  %s3 = inlined_call_operand.vmem [shape: f32[1152,1], index: 3, kind: input, shape index: {}]
  %s4 = inlined_call_operand.hbm [shape: f32[1152,256], index: 4, kind: output, shape index: {}]
  %s5 = sld [smem:[#allocation0]]
  $region49: #{tpu_custom_call.1} parent=0
    _
  %s7 = ssub.s32 1, %s5
  %s8 = scalar_select 0, %s7, %s5
  $region1: #{tpu_custom_call.1} parent=0
    #allocation2 [shape = 'u8[262144]{0}', space=vmem, size = 0x40000, scoped, tag = 'output window, operand 0']
    #allocation3 [shape = 's32[2]{0}', space=sflag, size = 0x8, scoped, tag = 'scoped memory for tpu_custom_call.1']
    %9 = vsyncpa [#allocation3], 0
    %s10 = scalar_lea.sflag [#allocation3], 1
    %11 = vsyncpa %s10, 0
    loop: start=0, step=1, limit=11
    $region2: #{tpu_custom_call.1} parent=1 // loop_pre_header
      _
    $region3: #{tpu_custom_call.1} parent=1 // loop_header
      %s13 = sphi 0, %s17
      %p14 = scmp.ge.s32.totalorder %s13, 11
      %s21 = sphi 0, %s21
      %s23 = sphi 0, %s21
      %s24 = sphi 0, %s23
      %s38 = sphi 0, %s24
      %s44 = sphi 0, %s46
      %s47 = sphi 0, %s44
      %s48 = sphi 0, %s47
      %s64 = sphi 0, %s48
      %s70 = sphi 0, %s72
      %s73 = sphi 0, %s70
      %s74 = sphi 0, %s73
      %s90 = sphi 0, %s74
      %s96 = sphi 0, %s98
      %s99 = sphi 0, %s96
      %s100 = sphi 0, %s99
      %s116 = sphi 0, %s100
      %s122 = sphi 0, %s124
      %s125 = sphi 0, %s122
      %s126 = sphi 0, %s125
      %s142 = sphi 0, %s126
    $region4: #{tpu_custom_call.1} parent=1 // loop_header_branch
      %16 = sbr.rel (%p14) target = $region8
    $region5: #{tpu_custom_call.1} parent=1 // loop_body
      %s18 = ssub.s32 %s13, 1
      %s19 = ssub.s32 %s13, 2
      %s20 = sadd.s32 %s13, 1
      %s22 = sadd.s32 %s21, 1
      %p25 = scmp.eq.s32.totalorder %s13, 8
      %p26 = scmp.ne.s32.totalorder %s21, %s23
      %p27 = scmp.eq.s32.totalorder %s13, 0
      %p28 = por %p26, %p27
      %p29 = scmp.ne.s32.totalorder %s21, %s23
      %p30 = scmp.eq.s32.totalorder %s18, 8
      %p31 = por %p29, %p30
      %p32 = scmp.ne.s32.totalorder %s23, %s24
      %p33 = scmp.eq.s32.totalorder %s18, 0
      %p34 = por %p32, %p33
      %p35 = scmp.ne.s32.totalorder %s23, %s24
      %p36 = scmp.eq.s32.totalorder %s19, 8
      %p37 = por %p35, %p36
      %p39 = scmp.ne.s32.totalorder %s24, %s38
      %p40 = scmp.eq.s32.totalorder %s19, 0
      %p41 = por %p39, %p40
      %s42 = ssub.s32 %s13, %s20
      %p43 = scmp.eq.s32.totalorder %s42, 0
      %s45 = sadd.s32 %s44, 1
      %s46 = scalar_select %p43, %s44, %s45
      %p49 = pneg %p43
      %p50 = scmp.eq.s32.totalorder %s13, 8
      %p51 = por %p49, %p50
      %p52 = scmp.ne.s32.totalorder %s44, %s47
      %p53 = scmp.eq.s32.totalorder %s13, 0
      %p54 = por %p52, %p53
      %p55 = scmp.ne.s32.totalorder %s44, %s47
      %p56 = scmp.eq.s32.totalorder %s18, 8
      %p57 = por %p55, %p56
      %p58 = scmp.ne.s32.totalorder %s47, %s48
      %p59 = scmp.eq.s32.totalorder %s18, 0
      %p60 = por %p58, %p59
      %p61 = scmp.ne.s32.totalorder %s47, %s48
      %p62 = scmp.eq.s32.totalorder %s19, 8
      %p63 = por %p61, %p62
      %p65 = scmp.ne.s32.totalorder %s48, %s64
      %p66 = scmp.eq.s32.totalorder %s19, 0
      %p67 = por %p65, %p66
      %s68 = ssub.s32 %s13, %s20
      %p69 = scmp.eq.s32.totalorder %s68, 0
      %s71 = sadd.s32 %s70, 1
      %s72 = scalar_select %p69, %s70, %s71
      %p75 = pneg %p69
      %p76 = scmp.eq.s32.totalorder %s13, 8
      %p77 = por %p75, %p76
      %p78 = scmp.ne.s32.totalorder %s70, %s73
      %p79 = scmp.eq.s32.totalorder %s13, 0
      %p80 = por %p78, %p79
      %p81 = scmp.ne.s32.totalorder %s70, %s73
      %p82 = scmp.eq.s32.totalorder %s18, 8
      %p83 = por %p81, %p82
      %p84 = scmp.ne.s32.totalorder %s73, %s74
      %p85 = scmp.eq.s32.totalorder %s18, 0
      %p86 = por %p84, %p85
      %p87 = scmp.ne.s32.totalorder %s73, %s74
      %p88 = scmp.eq.s32.totalorder %s19, 8
      %p89 = por %p87, %p88
      %p91 = scmp.ne.s32.totalorder %s74, %s90
      %p92 = scmp.eq.s32.totalorder %s19, 0
      %p93 = por %p91, %p92
      %s94 = ssub.s32 %s13, %s20
      %p95 = scmp.eq.s32.totalorder %s94, 0
      %s97 = sadd.s32 %s96, 1
      %s98 = scalar_select %p95, %s96, %s97
      %p101 = pneg %p95
      %p102 = scmp.eq.s32.totalorder %s13, 8
      %p103 = por %p101, %p102
      %p104 = scmp.ne.s32.totalorder %s96, %s99
      %p105 = scmp.eq.s32.totalorder %s13, 0
      %p106 = por %p104, %p105
      %p107 = scmp.ne.s32.totalorder %s96, %s99
      %p108 = scmp.eq.s32.totalorder %s18, 8
      %p109 = por %p107, %p108
      %p110 = scmp.ne.s32.totalorder %s99, %s100
      %p111 = scmp.eq.s32.totalorder %s18, 0
      %p112 = por %p110, %p111
      %p113 = scmp.ne.s32.totalorder %s99, %s100
      %p114 = scmp.eq.s32.totalorder %s19, 8
      %p115 = por %p113, %p114
      %p117 = scmp.ne.s32.totalorder %s100, %s116
      %p118 = scmp.eq.s32.totalorder %s19, 0
      %p119 = por %p117, %p118
      %s120 = ssub.s32 %s13, %s20
      %p121 = scmp.eq.s32.totalorder %s120, 0
      %s123 = sadd.s32 %s122, 1
      %s124 = scalar_select %p121, %s122, %s123
      %p127 = pneg %p121
      %p128 = scmp.eq.s32.totalorder %s13, 8
      %p129 = por %p127, %p128
      %p130 = scmp.ne.s32.totalorder %s122, %s125
      %p131 = scmp.eq.s32.totalorder %s13, 0
      %p132 = por %p130, %p131
      %p133 = scmp.ne.s32.totalorder %s122, %s125
      %p134 = scmp.eq.s32.totalorder %s18, 8
      %p135 = por %p133, %p134
      %p136 = scmp.ne.s32.totalorder %s125, %s126
      %p137 = scmp.eq.s32.totalorder %s18, 0
      %p138 = por %p136, %p137
      %p139 = scmp.ne.s32.totalorder %s125, %s126
      %p140 = scmp.eq.s32.totalorder %s19, 8
      %p141 = por %p139, %p140
      %p143 = scmp.ne.s32.totalorder %s126, %s142
      %p144 = scmp.eq.s32.totalorder %s19, 0
      %p145 = por %p143, %p144
      %p146 = scmp.le.s32.totalorder 1, %s13
      %p147 = scmp.lt.s32.totalorder %s13, 10
      %p148 = pnand %p146, %p147
      %p149 = pneg %p148
      // Predicated region
      $region9: #{tpu_custom_call.1} parent=5 // pred_check
        _
      $region10: #{tpu_custom_call.1} parent=5 // pred_check_branch
        %151 = sbr.rel (%p148) target = $region12
      $region11: #{tpu_custom_call.1} parent=5 // pred_region
        %s152 = ssub.s32 %s13, 1
        // Predicated region
        $region13: #{tpu_custom_call.1} parent=11 // pred_check
          %p153 = pneg %p34
        $region14: #{tpu_custom_call.1} parent=11 // pred_check_branch
          %155 = sbr.rel (%p153) target = $region16
        $region15: #{tpu_custom_call.1} parent=11 // pred_region
          _
        $region16: #{tpu_custom_call.1} parent=11 // pred_fallthru
          _
      $region12: #{tpu_custom_call.1} parent=5 // pred_fallthru
        _
      %p156 = scmp.lt.s32.totalorder %s13, 9
      // Predicated region
      $region17: #{tpu_custom_call.1} parent=5 // pred_check
        %p157 = pneg %p156
      $region18: #{tpu_custom_call.1} parent=5 // pred_check_branch
        %159 = sbr.rel (%p157) target = $region20
      $region19: #{tpu_custom_call.1} parent=5 // pred_region
        // Predicated region
        $region21: #{tpu_custom_call.1} parent=19 // pred_check
          %p160 = pneg %p54
        $region22: #{tpu_custom_call.1} parent=19 // pred_check_branch
          %162 = sbr.rel (%p160) target = $region24
        $region23: #{tpu_custom_call.1} parent=19 // pred_region
          %s163 = smul.u32 16, %s13
          %p164 = scmp.lt.s32.totalorder %s163, 143
          %s165 = scalar_select %p164, %s163, 143
          %s166 = smul.addr %s165, 2
          %s167 = smul.addr %s166, 4
          %s168 = scalar_lea.vmem %s1, %s167
          %s169 = smul.u32 16, %s13
        $region24: #{tpu_custom_call.1} parent=19 // pred_fallthru
          _
        // Predicated region
        $region25: #{tpu_custom_call.1} parent=19 // pred_check
          %p170 = pneg %p80
        $region26: #{tpu_custom_call.1} parent=19 // pred_check_branch
          %172 = sbr.rel (%p170) target = $region28
        $region27: #{tpu_custom_call.1} parent=19 // pred_region
          %s173 = smul.u32 16, %s13
          %p174 = scmp.lt.s32.totalorder %s173, 143
          %s175 = scalar_select %p174, %s173, 143
          %s176 = smul.addr %s175, 8
          %s177 = scalar_lea.vmem %s2, %s176
          %s178 = smul.u32 16, %s13
        $region28: #{tpu_custom_call.1} parent=19 // pred_fallthru
          _
        // Predicated region
        $region29: #{tpu_custom_call.1} parent=19 // pred_check
          %p179 = pneg %p106
        $region30: #{tpu_custom_call.1} parent=19 // pred_check_branch
          %181 = sbr.rel (%p179) target = $region32
        $region31: #{tpu_custom_call.1} parent=19 // pred_region
          %s182 = smul.u32 16, %s13
          %p183 = scmp.lt.s32.totalorder %s182, 143
          %s184 = scalar_select %p183, %s182, 143
          %s185 = smul.addr %s184, 8
          %s186 = scalar_lea.vmem %s3, %s185
          %s187 = smul.u32 16, %s13
        $region32: #{tpu_custom_call.1} parent=19 // pred_fallthru
          _
      $region20: #{tpu_custom_call.1} parent=5 // pred_fallthru
        _
      %p188 = scmp.le.s32.totalorder 1, %s13
      %p189 = scmp.lt.s32.totalorder %s13, 10
      %p190 = pnand %p188, %p189
      %p191 = pneg %p190
      // Predicated region
      $region33: #{tpu_custom_call.1} parent=5 // pred_check
        _
      $region34: #{tpu_custom_call.1} parent=5 // pred_check_branch
        %193 = sbr.rel (%p190) target = $region36
      $region35: #{tpu_custom_call.1} parent=5 // pred_region
        %s194 = ssub.s32 %s13, 1
        %p195 = pneg %p34
        %p196 = pneg %p31
        %s197 = smul.u32 16, %s18
        %p198 = scmp.lt.s32.totalorder %s197, 143
        %s199 = scalar_select %p198, %s197, 143
        %s200 = smul.addr %s199, 2
        %s201 = smul.addr %s200, 4
        %s202 = scalar_lea.vmem %s1, %s201
        %p203 = pneg %p60
        %p204 = pneg %p57
        %s205 = smul.u32 16, %s18
        %p206 = scmp.lt.s32.totalorder %s205, 143
        %s207 = scalar_select %p206, %s205, 143
        %s208 = smul.addr %s207, 8
        %s209 = scalar_lea.vmem %s2, %s208
        %p210 = pneg %p86
        %p211 = pneg %p83
        %s212 = smul.u32 16, %s18
        %p213 = scmp.lt.s32.totalorder %s212, 143
        %s214 = scalar_select %p213, %s212, 143
        %s215 = smul.addr %s214, 8
        %s216 = scalar_lea.vmem %s3, %s215
        %p217 = pneg %p112
        %p218 = pneg %p109
        %p219 = pneg %p138
        %p220 = pneg %p135
        %s221 = sand.u32 %s125, 1
        %s222 = scalar_lea.sflag [#allocation3], %s221
        %s223 = sand.u32 %s125, 1
        %s224 = smul.addr %s223, 256
        %s225 = scalar_lea.vmem [#allocation2], %s224
        %s226 = smul.u32 16, %s18
        %p227 = scmp.lt.s32.totalorder %s226, 143
        %s228 = scalar_select %p227, %s226, 143
        %s229 = smul.addr %s228, 2
        %s230 = smul.addr %s229, 4
        %s231 = scalar_lea.vmem %s1, %s230
        %s232 = smul.u32 16, %s18
        %s233 = smul.u32 16, %s18
        %p234 = scmp.lt.s32.totalorder %s233, 143
        %s235 = scalar_select %p234, %s233, 143
        %s236 = smul.addr %s235, 8
        %s237 = scalar_lea.vmem %s2, %s236
        %s238 = smul.u32 16, %s18
        %s239 = smul.u32 16, %s18
        %p240 = scmp.lt.s32.totalorder %s239, 143
        %s241 = scalar_select %p240, %s239, 143
        %s242 = smul.addr %s241, 8
        %s243 = scalar_lea.vmem %s3, %s242
        %s244 = smul.u32 16, %s18
        %s245 = smul.u32 16, %s18
        %v247 = vld [vmem:[%s231] sm:$0xff]
        %v248 = vld [vmem:[%s231 + $0x8] sm:$0xff]
        %v249 = vld [vmem:[%s231 + $0x10] sm:$0xff]
        %v250 = vld [vmem:[%s231 + $0x18] sm:$0xff]
        %v251 = vld [vmem:[%s231 + $0x20] sm:$0xff]
        %v252 = vld [vmem:[%s231 + $0x28] sm:$0xff]
        %v253 = vld [vmem:[%s231 + $0x30] sm:$0xff]
        %v254 = vld [vmem:[%s231 + $0x38] sm:$0xff]
        %v255 = vld [vmem:[%s231 + $0x40] sm:$0xff]
        %v256 = vld [vmem:[%s231 + $0x48] sm:$0xff]
        %v257 = vld [vmem:[%s231 + $0x50] sm:$0xff]
        %v258 = vld [vmem:[%s231 + $0x58] sm:$0xff]
        %v259 = vld [vmem:[%s231 + $0x60] sm:$0xff]
        %v260 = vld [vmem:[%s231 + $0x68] sm:$0xff]
        %v261 = vld [vmem:[%s231 + $0x70] sm:$0xff]
        %v262 = vld [vmem:[%s231 + $0x78] sm:$0xff]
        %v263 = vld [vmem:[%s0] sm:$0xff]
        %v264 = vld [vmem:[%s0 + $0x8] sm:$0xff]
        %v265 = vld [vmem:[%s0 + $0x10] sm:$0xff]
        %v266 = vld [vmem:[%s0 + $0x18] sm:$0xff]
        %v267 = vld [vmem:[%s0 + $0x20] sm:$0xff]
        %v268 = vld [vmem:[%s0 + $0x28] sm:$0xff]
        %v269 = vld [vmem:[%s0 + $0x30] sm:$0xff]
        %v270 = vld [vmem:[%s0 + $0x38] sm:$0xff]
        %v271 = vld [vmem:[%s0 + $0x40] sm:$0xff]
        %v272 = vld [vmem:[%s0 + $0x48] sm:$0xff]
        %v273 = vld [vmem:[%s0 + $0x50] sm:$0xff]
        %v274 = vld [vmem:[%s0 + $0x58] sm:$0xff]
        %v275 = vld [vmem:[%s0 + $0x60] sm:$0xff]
        %v276 = vld [vmem:[%s0 + $0x68] sm:$0xff]
        %v277 = vld [vmem:[%s0 + $0x70] sm:$0xff]
        %v278 = vld [vmem:[%s0 + $0x78] sm:$0xff]
        %v279 = vld [vmem:[%s0 + $0x80] sm:$0xff]
        %v280 = vld [vmem:[%s0 + $0x88] sm:$0xff]
        %v281 = vld [vmem:[%s0 + $0x90] sm:$0xff]
        %v282 = vld [vmem:[%s0 + $0x98] sm:$0xff]
        %v283 = vld [vmem:[%s0 + $0xa0] sm:$0xff]
        %v284 = vld [vmem:[%s0 + $0xa8] sm:$0xff]
        %v301 = vunpack.c.l.b16 %v247
        %v302 = vunpack.c.h.b16 %v247
        %v303 = vunpack.c.l.b16 %v248
        %v304 = vunpack.c.h.b16 %v248
        %v305 = vunpack.c.l.b16 %v249
        %v306 = vunpack.c.h.b16 %v249
        %v307 = vunpack.c.l.b16 %v250
        %v308 = vunpack.c.h.b16 %v250
        %v309 = vunpack.c.l.b16 %v251
        %v310 = vunpack.c.h.b16 %v251
        %v311 = vunpack.c.l.b16 %v252
        %v312 = vunpack.c.h.b16 %v252
        %v313 = vunpack.c.l.b16 %v253
        %v314 = vunpack.c.h.b16 %v253
        %v315 = vunpack.c.l.b16 %v254
        %v316 = vunpack.c.h.b16 %v254
        %v317 = vunpack.c.l.b16 %v255
        %v318 = vunpack.c.h.b16 %v255
        %v319 = vunpack.c.l.b16 %v256
        %v320 = vunpack.c.h.b16 %v256
        %v321 = vunpack.c.l.b16 %v257
        %v322 = vunpack.c.h.b16 %v257
        %v323 = vunpack.c.l.b16 %v258
        %v324 = vunpack.c.h.b16 %v258
        %v325 = vunpack.c.l.b16 %v259
        %v326 = vunpack.c.h.b16 %v259
        %v327 = vunpack.c.l.b16 %v260
        %v328 = vunpack.c.h.b16 %v260
        %v329 = vunpack.c.l.b16 %v261
        %v330 = vunpack.c.h.b16 %v261
        %v331 = vunpack.c.l.b16 %v262
        %v332 = vunpack.c.h.b16 %v262
        %v333 = vpack.c.b16 %v303, %v301
        %v334 = vpack.c.b16 %v304, %v302
        %v335 = vpack.c.b16 %v307, %v305
        %v336 = vpack.c.b16 %v308, %v306
        %v337 = vpack.c.b16 %v311, %v309
        %v338 = vpack.c.b16 %v312, %v310
        %v339 = vpack.c.b16 %v315, %v313
        %v340 = vpack.c.b16 %v316, %v314
        %v341 = vpack.c.b16 %v319, %v317
        %v342 = vpack.c.b16 %v320, %v318
        %v343 = vpack.c.b16 %v323, %v321
        %v344 = vpack.c.b16 %v324, %v322
        %v345 = vpack.c.b16 %v327, %v325
        %v346 = vpack.c.b16 %v328, %v326
        %v347 = vpack.c.b16 %v331, %v329
        %v348 = vpack.c.b16 %v332, %v330
        %v379 = vunpack.c.l.b16 %v263
        %v380 = vunpack.c.h.b16 %v263
        %v381 = vunpack.c.l.b16 %v264
        %v382 = vunpack.c.h.b16 %v264
        %v383 = vunpack.c.l.b16 %v265
        %v384 = vunpack.c.h.b16 %v265
        %v385 = vunpack.c.l.b16 %v266
        %v386 = vunpack.c.h.b16 %v266
        %v387 = vunpack.c.l.b16 %v267
        %v388 = vunpack.c.h.b16 %v267
        %v389 = vunpack.c.l.b16 %v268
        %v390 = vunpack.c.h.b16 %v268
        %v391 = vunpack.c.l.b16 %v269
        %v392 = vunpack.c.h.b16 %v269
        %v393 = vunpack.c.l.b16 %v270
        %v394 = vunpack.c.h.b16 %v270
        %v395 = vunpack.c.l.b16 %v271
        %v396 = vunpack.c.h.b16 %v271
        %v397 = vunpack.c.l.b16 %v272
        %v398 = vunpack.c.h.b16 %v272
        %v399 = vunpack.c.l.b16 %v273
        %v400 = vunpack.c.h.b16 %v273
        %v401 = vunpack.c.l.b16 %v274
        %v402 = vunpack.c.h.b16 %v274
        %v403 = vunpack.c.l.b16 %v275
        %v404 = vunpack.c.h.b16 %v275
        %v405 = vunpack.c.l.b16 %v276
        %v406 = vunpack.c.h.b16 %v276
        %v407 = vunpack.c.l.b16 %v277
        %v408 = vunpack.c.h.b16 %v277
        %v409 = vunpack.c.l.b16 %v278
        %v410 = vunpack.c.h.b16 %v278
        %v411 = vunpack.c.l.b16 %v279
        %v412 = vunpack.c.h.b16 %v279
        %v413 = vunpack.c.l.b16 %v280
        %v414 = vunpack.c.h.b16 %v280
        %v415 = vunpack.c.l.b16 %v281
        %v416 = vunpack.c.h.b16 %v281
        %v417 = vunpack.c.l.b16 %v282
        %v418 = vunpack.c.h.b16 %v282
        %v419 = vunpack.c.l.b16 %v283
        %v420 = vunpack.c.h.b16 %v283
        %v421 = vunpack.c.l.b16 %v284
        %v422 = vunpack.c.h.b16 %v284
        %v423 = vpack.c.b16 %v381, %v379
        %v424 = vpack.c.b16 %v382, %v380
        %v425 = vpack.c.b16 %v385, %v383
        %v426 = vpack.c.b16 %v386, %v384
        %v427 = vpack.c.b16 %v389, %v387
        %v428 = vpack.c.b16 %v390, %v388
        %v429 = vpack.c.b16 %v393, %v391
        %v430 = vpack.c.b16 %v394, %v392
        %v431 = vpack.c.b16 %v397, %v395
        %v432 = vpack.c.b16 %v398, %v396
        %v433 = vpack.c.b16 %v401, %v399
        %v434 = vpack.c.b16 %v402, %v400
        %v435 = vpack.c.b16 %v405, %v403
        %v436 = vpack.c.b16 %v406, %v404
        %v437 = vpack.c.b16 %v409, %v407
        %v438 = vpack.c.b16 %v410, %v408
        %v439 = vpack.c.b16 %v413, %v411
        %v440 = vpack.c.b16 %v414, %v412
        %v441 = vpack.c.b16 %v417, %v415
        %v442 = vpack.c.b16 %v418, %v416
        %v443 = vpack.c.b16 %v421, %v419
        %v444 = vpack.c.b16 %v422, %v420
        %vm467 = vcmask 392192
        %v469 = vsel %vm467, %v334, 0
        %v472 = vsel %vm467, %v336, 0
        %v475 = vsel %vm467, %v338, 0
        %v478 = vsel %vm467, %v340, 0
        %v481 = vsel %vm467, %v342, 0
        %v484 = vsel %vm467, %v344, 0
        %v487 = vsel %vm467, %v346, 0
        %v490 = vsel %vm467, %v348, 0
        %492 = vmatprep.subr.bf16.mxu0 %v424
        %493 = vmatpush1.bf16.msra.mxu0 %v423
        %494 = vmatprep.subr.bf16.mxu0 %v426
        %495 = vmatpush1.bf16.msra.mxu0 %v425
        %496 = vmatprep.subr.bf16.mxu0 %v428
        %497 = vmatpush1.bf16.msra.mxu0 %v427
        %498 = vmatprep.subr.bf16.mxu0 %v430
        %499 = vmatpush1.bf16.msra.mxu0 %v429
        %500 = vmatprep.subr.bf16.mxu0 %v432
        %501 = vmatpush1.bf16.msra.mxu0 %v431
        %502 = vmatprep.subr.bf16.mxu0 %v434
        %503 = vmatpush1.bf16.msra.mxu0 %v433
        %504 = vmatprep.subr.bf16.mxu0 %v436
        %505 = vmatpush1.bf16.msra.mxu0 %v435
        %506 = vmatprep.subr.bf16.mxu0 %v438
        %507 = vmatpush1.bf16.msra.mxu0 %v437
        %508 = vmatprep.subr.bf16.mxu0 %v440
        %509 = vmatpush1.bf16.msra.mxu0 %v439
        %510 = vmatprep.subr.bf16.mxu0 %v442
        %511 = vmatpush1.bf16.msra.mxu0 %v441
        %512 = vmatprep.subr.bf16.mxu0 %v444
        %513 = vmatpush1.bf16.msra.mxu0 %v443
        %514 = vmatprep.subr.bf16.mxu0 0
        %515 = vmatpush1.bf16.msra.mxu0 0
        %516 = vmatprep.subr.bf16.mxu0 0
        %517 = vmatpush1.bf16.msra.mxu0 0
        %518 = vmatprep.subr.bf16.mxu0 0
        %519 = vmatpush1.bf16.msra.mxu0 0
        %520 = vmatprep.subr.bf16.mxu0 0
        %521 = vmatpush1.bf16.msra.mxu0 0
        %522 = vmatprep.subr.bf16.mxu0 0
        %523 = vmatpush1.bf16.msra.mxu0 0
        %524 = vmatprep.mubr.bf16.mxu0 %v469
        %525 = vmatmul.mubr.bf16.gmra.mrb[0].mxu0 %v333
        %v526 = vpop.f32.mrb[0].mxu0
        %v527 = vadd.f32 0.0, %v526
        %v528 = vpop.f32.mrb[0].mxu0
        %v529 = vadd.f32 0.0, %v528
        %v530 = vpop.f32.mrb[0].mxu0
        %v531 = vadd.f32 0.0, %v530
        %v532 = vpop.f32.mrb[0].mxu0
        %v533 = vadd.f32 0.0, %v532
        %534 = vmatprep.mubr.bf16.mxu0 %v472
        %535 = vmatmul.mubr.bf16.gmra.mrb[0].mxu0 %v335
        %v536 = vpop.f32.mrb[0].mxu0
        %v537 = vadd.f32 0.0, %v536
        %v538 = vpop.f32.mrb[0].mxu0
        %v539 = vadd.f32 0.0, %v538
        %v540 = vpop.f32.mrb[0].mxu0
        %v541 = vadd.f32 0.0, %v540
        %v542 = vpop.f32.mrb[0].mxu0
        %v543 = vadd.f32 0.0, %v542
        %544 = vmatprep.mubr.bf16.mxu0 %v475
        %545 = vmatmul.mubr.bf16.gmra.mrb[0].mxu0 %v337
        %v546 = vpop.f32.mrb[0].mxu0
        %v547 = vadd.f32 0.0, %v546
        %v548 = vpop.f32.mrb[0].mxu0
        %v549 = vadd.f32 0.0, %v548
        %v550 = vpop.f32.mrb[0].mxu0
        %v551 = vadd.f32 0.0, %v550
        %v552 = vpop.f32.mrb[0].mxu0
        %v553 = vadd.f32 0.0, %v552
        %554 = vmatprep.mubr.bf16.mxu0 %v478
        %555 = vmatmul.mubr.bf16.gmra.mrb[0].mxu0 %v339
        %v556 = vpop.f32.mrb[0].mxu0
        %v557 = vadd.f32 0.0, %v556
        %v558 = vpop.f32.mrb[0].mxu0
        %v559 = vadd.f32 0.0, %v558
        %v560 = vpop.f32.mrb[0].mxu0
        %v561 = vadd.f32 0.0, %v560
        %v562 = vpop.f32.mrb[0].mxu0
        %v563 = vadd.f32 0.0, %v562
        %564 = vmatprep.mubr.bf16.mxu0 %v481
        %565 = vmatmul.mubr.bf16.gmra.mrb[0].mxu0 %v341
        %v566 = vpop.f32.mrb[0].mxu0
        %v567 = vadd.f32 0.0, %v566
        %v568 = vpop.f32.mrb[0].mxu0
        %v569 = vadd.f32 0.0, %v568
        %v570 = vpop.f32.mrb[0].mxu0
        %v571 = vadd.f32 0.0, %v570
        %v572 = vpop.f32.mrb[0].mxu0
        %v573 = vadd.f32 0.0, %v572
        %574 = vmatprep.mubr.bf16.mxu0 %v484
        %575 = vmatmul.mubr.bf16.gmra.mrb[0].mxu0 %v343
        %v576 = vpop.f32.mrb[0].mxu0
        %v577 = vadd.f32 0.0, %v576
        %v578 = vpop.f32.mrb[0].mxu0
        %v579 = vadd.f32 0.0, %v578
        %v580 = vpop.f32.mrb[0].mxu0
        %v581 = vadd.f32 0.0, %v580
        %v582 = vpop.f32.mrb[0].mxu0
        %v583 = vadd.f32 0.0, %v582
        %584 = vmatprep.mubr.bf16.mxu0 %v487
        %585 = vmatmul.mubr.bf16.gmra.mrb[0].mxu0 %v345
        %v586 = vpop.f32.mrb[0].mxu0
        %v587 = vadd.f32 0.0, %v586
        %v588 = vpop.f32.mrb[0].mxu0
        %v589 = vadd.f32 0.0, %v588
        %v590 = vpop.f32.mrb[0].mxu0
        %v591 = vadd.f32 0.0, %v590
        %v592 = vpop.f32.mrb[0].mxu0
        %v593 = vadd.f32 0.0, %v592
        %594 = vmatprep.mubr.bf16.mxu0 %v490
        %595 = vmatmul.mubr.bf16.gmra.mrb[0].mxu0 %v347
        %v596 = vpop.f32.mrb[0].mxu0
        %v597 = vadd.f32 0.0, %v596
        %v598 = vpop.f32.mrb[0].mxu0
        %v599 = vadd.f32 0.0, %v598
        %v600 = vpop.f32.mrb[0].mxu0
        %v601 = vadd.f32 0.0, %v600
        %v602 = vpop.f32.mrb[0].mxu0
        %v603 = vadd.f32 0.0, %v602
        %604 = vdwg.mxu0
        %v605 = vadd.f32 %v527, %v529
        %606 = vadd.xlane.f32.xlu0 %v605
        %v607 = vpop.xlane.xlu0 %606
        %v608 = vadd.f32 %v531, %v533
        %609 = vadd.xlane.f32.xlu0 %v608
        %v610 = vpop.xlane.xlu0 %609
        %v611 = vadd.f32 %v537, %v539
        %612 = vadd.xlane.f32.xlu0 %v611
        %v613 = vpop.xlane.xlu0 %612
        %v614 = vadd.f32 %v541, %v543
        %615 = vadd.xlane.f32.xlu0 %v614
        %v616 = vpop.xlane.xlu0 %615
        %v617 = vadd.f32 %v547, %v549
        %618 = vadd.xlane.f32.xlu0 %v617
        %v619 = vpop.xlane.xlu0 %618
        %v620 = vadd.f32 %v551, %v553
        %621 = vadd.xlane.f32.xlu0 %v620
        %v622 = vpop.xlane.xlu0 %621
        %v623 = vadd.f32 %v557, %v559
        %624 = vadd.xlane.f32.xlu0 %v623
        %v625 = vpop.xlane.xlu0 %624
        %v626 = vadd.f32 %v561, %v563
        %627 = vadd.xlane.f32.xlu0 %v626
        %v628 = vpop.xlane.xlu0 %627
        %v629 = vadd.f32 %v567, %v569
        %630 = vadd.xlane.f32.xlu0 %v629
        %v631 = vpop.xlane.xlu0 %630
        %v632 = vadd.f32 %v571, %v573
        %633 = vadd.xlane.f32.xlu0 %v632
        %v634 = vpop.xlane.xlu0 %633
        %v635 = vadd.f32 %v577, %v579
        %636 = vadd.xlane.f32.xlu0 %v635
        %v637 = vpop.xlane.xlu0 %636
        %v638 = vadd.f32 %v581, %v583
        %639 = vadd.xlane.f32.xlu0 %v638
        %v640 = vpop.xlane.xlu0 %639
        %v641 = vadd.f32 %v587, %v589
        %642 = vadd.xlane.f32.xlu0 %v641
        %v643 = vpop.xlane.xlu0 %642
        %v644 = vadd.f32 %v591, %v593
        %645 = vadd.xlane.f32.xlu0 %v644
        %v646 = vpop.xlane.xlu0 %645
        %v647 = vadd.f32 %v597, %v599
        %648 = vadd.xlane.f32.xlu0 %v647
        %v649 = vpop.xlane.xlu0 %648
        %v650 = vadd.f32 %v601, %v603
        %651 = vadd.xlane.f32.xlu0 %v650
        %v652 = vpop.xlane.xlu0 %651
        %v653 = vmul.f32 %v527, %v527
        %v654 = vmul.f32 %v529, %v529
        %v655 = vmul.f32 %v531, %v531
        %v656 = vmul.f32 %v533, %v533
        %v657 = vmul.f32 %v537, %v537
        %v658 = vmul.f32 %v539, %v539
        %v659 = vmul.f32 %v541, %v541
        %v660 = vmul.f32 %v543, %v543
        %v661 = vmul.f32 %v547, %v547
        %v662 = vmul.f32 %v549, %v549
        %v663 = vmul.f32 %v551, %v551
        %v664 = vmul.f32 %v553, %v553
        %v665 = vmul.f32 %v557, %v557
        %v666 = vmul.f32 %v559, %v559
        %v667 = vmul.f32 %v561, %v561
        %v668 = vmul.f32 %v563, %v563
        %v669 = vmul.f32 %v567, %v567
        %v670 = vmul.f32 %v569, %v569
        %v671 = vmul.f32 %v571, %v571
        %v672 = vmul.f32 %v573, %v573
        %v673 = vmul.f32 %v577, %v577
        %v674 = vmul.f32 %v579, %v579
        %v675 = vmul.f32 %v581, %v581
        %v676 = vmul.f32 %v583, %v583
        %v677 = vmul.f32 %v587, %v587
        %v678 = vmul.f32 %v589, %v589
        %v679 = vmul.f32 %v591, %v591
        %v680 = vmul.f32 %v593, %v593
        %v681 = vmul.f32 %v597, %v597
        %v682 = vmul.f32 %v599, %v599
        %v683 = vmul.f32 %v601, %v601
        %v684 = vmul.f32 %v603, %v603
        %v685 = vadd.f32 %v653, %v654
        %686 = vadd.xlane.f32.xlu0 %v685
        %v687 = vpop.xlane.xlu0 %686
        %v688 = vadd.f32 %v655, %v656
        %689 = vadd.xlane.f32.xlu0 %v688
        %v690 = vpop.xlane.xlu0 %689
        %v691 = vadd.f32 %v657, %v658
        %692 = vadd.xlane.f32.xlu0 %v691
        %v693 = vpop.xlane.xlu0 %692
        %v694 = vadd.f32 %v659, %v660
        %695 = vadd.xlane.f32.xlu0 %v694
        %v696 = vpop.xlane.xlu0 %695
        %v697 = vadd.f32 %v661, %v662
        %698 = vadd.xlane.f32.xlu0 %v697
        %v699 = vpop.xlane.xlu0 %698
        %v700 = vadd.f32 %v663, %v664
        %701 = vadd.xlane.f32.xlu0 %v700
        %v702 = vpop.xlane.xlu0 %701
        %v703 = vadd.f32 %v665, %v666
        %704 = vadd.xlane.f32.xlu0 %v703
        %v705 = vpop.xlane.xlu0 %704
        %v706 = vadd.f32 %v667, %v668
        %707 = vadd.xlane.f32.xlu0 %v706
        %v708 = vpop.xlane.xlu0 %707
        %v709 = vadd.f32 %v669, %v670
        %710 = vadd.xlane.f32.xlu0 %v709
        %v711 = vpop.xlane.xlu0 %710
        %v712 = vadd.f32 %v671, %v672
        %713 = vadd.xlane.f32.xlu0 %v712
        %v714 = vpop.xlane.xlu0 %713
        %v715 = vadd.f32 %v673, %v674
        %716 = vadd.xlane.f32.xlu0 %v715
        %v717 = vpop.xlane.xlu0 %716
        %v718 = vadd.f32 %v675, %v676
        %719 = vadd.xlane.f32.xlu0 %v718
        %v720 = vpop.xlane.xlu0 %719
        %v721 = vadd.f32 %v677, %v678
        %722 = vadd.xlane.f32.xlu0 %v721
        %v723 = vpop.xlane.xlu0 %722
        %v724 = vadd.f32 %v679, %v680
        %725 = vadd.xlane.f32.xlu0 %v724
        %v726 = vpop.xlane.xlu0 %725
        %v727 = vadd.f32 %v681, %v682
        %728 = vadd.xlane.f32.xlu0 %v727
        %v729 = vpop.xlane.xlu0 %728
        %v730 = vadd.f32 %v683, %v684
        %731 = vadd.xlane.f32.xlu0 %v730
        %v732 = vpop.xlane.xlu0 %731
        %v733 = vmul.f32 %v607, 0.0051020407
        %v734 = vmul.f32 %v610, 0.0051020407
        %v735 = vmul.f32 %v613, 0.0051020407
        %v736 = vmul.f32 %v616, 0.0051020407
        %v737 = vmul.f32 %v619, 0.0051020407
        %v738 = vmul.f32 %v622, 0.0051020407
        %v739 = vmul.f32 %v625, 0.0051020407
        %v740 = vmul.f32 %v628, 0.0051020407
        %v741 = vmul.f32 %v631, 0.0051020407
        %v742 = vmul.f32 %v634, 0.0051020407
        %v743 = vmul.f32 %v637, 0.0051020407
        %v744 = vmul.f32 %v640, 0.0051020407
        %v745 = vmul.f32 %v643, 0.0051020407
        %v746 = vmul.f32 %v646, 0.0051020407
        %v747 = vmul.f32 %v649, 0.0051020407
        %v748 = vmul.f32 %v652, 0.0051020407
        %v749 = vmul.f32 %v687, 0.0051020407
        %v750 = vmul.f32 %v690, 0.0051020407
        %v751 = vmul.f32 %v693, 0.0051020407
        %v752 = vmul.f32 %v696, 0.0051020407
        %v753 = vmul.f32 %v699, 0.0051020407
        %v754 = vmul.f32 %v702, 0.0051020407
        %v755 = vmul.f32 %v705, 0.0051020407
        %v756 = vmul.f32 %v708, 0.0051020407
        %v757 = vmul.f32 %v711, 0.0051020407
        %v758 = vmul.f32 %v714, 0.0051020407
        %v759 = vmul.f32 %v717, 0.0051020407
        %v760 = vmul.f32 %v720, 0.0051020407
        %v761 = vmul.f32 %v723, 0.0051020407
        %v762 = vmul.f32 %v726, 0.0051020407
        %v763 = vmul.f32 %v729, 0.0051020407
        %v764 = vmul.f32 %v732, 0.0051020407
        %v765 = vmul.f32 %v733, %v733
        %v766 = vmul.f32 %v734, %v734
        %v767 = vmul.f32 %v735, %v735
        %v768 = vmul.f32 %v736, %v736
        %v769 = vmul.f32 %v737, %v737
        %v770 = vmul.f32 %v738, %v738
        %v771 = vmul.f32 %v739, %v739
        %v772 = vmul.f32 %v740, %v740
        %v773 = vmul.f32 %v741, %v741
        %v774 = vmul.f32 %v742, %v742
        %v775 = vmul.f32 %v743, %v743
        %v776 = vmul.f32 %v744, %v744
        %v777 = vmul.f32 %v745, %v745
        %v778 = vmul.f32 %v746, %v746
        %v779 = vmul.f32 %v747, %v747
        %v780 = vmul.f32 %v748, %v748
        %v781 = vsub.f32 %v749, %v765
        %v782 = vsub.f32 %v750, %v766
        %v783 = vsub.f32 %v751, %v767
        %v784 = vsub.f32 %v752, %v768
        %v785 = vsub.f32 %v753, %v769
        %v786 = vsub.f32 %v754, %v770
        %v787 = vsub.f32 %v755, %v771
        %v788 = vsub.f32 %v756, %v772
        %v789 = vsub.f32 %v757, %v773
        %v790 = vsub.f32 %v758, %v774
        %v791 = vsub.f32 %v759, %v775
        %v792 = vsub.f32 %v760, %v776
        %v793 = vsub.f32 %v761, %v777
        %v794 = vsub.f32 %v762, %v778
        %v795 = vsub.f32 %v763, %v779
        %v796 = vsub.f32 %v764, %v780
        %v797 = vadd.f32 %v781, 0.001
        %v798 = vadd.f32 %v782, 0.001
        %v799 = vadd.f32 %v783, 0.001
        %v800 = vadd.f32 %v784, 0.001
        %v801 = vadd.f32 %v785, 0.001
        %v802 = vadd.f32 %v786, 0.001
        %v803 = vadd.f32 %v787, 0.001
        %v804 = vadd.f32 %v788, 0.001
        %v805 = vadd.f32 %v789, 0.001
        %v806 = vadd.f32 %v790, 0.001
        %v807 = vadd.f32 %v791, 0.001
        %v808 = vadd.f32 %v792, 0.001
        %v809 = vadd.f32 %v793, 0.001
        %v810 = vadd.f32 %v794, 0.001
        %v811 = vadd.f32 %v795, 0.001
        %v812 = vadd.f32 %v796, 0.001
        %v813 = vrsqrt.pop %v797
        %v814 = vrsqrt.pop %v798
        %v815 = vrsqrt.pop %v799
        %v816 = vrsqrt.pop %v800
        %v817 = vrsqrt.pop %v801
        %v818 = vrsqrt.pop %v802
        %v819 = vrsqrt.pop %v803
        %v820 = vrsqrt.pop %v804
        %v821 = vrsqrt.pop %v805
        %v822 = vrsqrt.pop %v806
        %v823 = vrsqrt.pop %v807
        %v824 = vrsqrt.pop %v808
        %v825 = vrsqrt.pop %v809
        %v826 = vrsqrt.pop %v810
        %v827 = vrsqrt.pop %v811
        %v828 = vrsqrt.pop %v812
        %v829 = vld [vmem:[%s237] sm:$0xff]
        %v830 = vld [vmem:[%s237 + $0x8] sm:$0xff]
        %v831 = vld [vmem:[%s237 + $0x10] sm:$0xff]
        %v832 = vld [vmem:[%s237 + $0x18] sm:$0xff]
        %v833 = vld [vmem:[%s237 + $0x20] sm:$0xff]
        %v834 = vld [vmem:[%s237 + $0x28] sm:$0xff]
        %v835 = vld [vmem:[%s237 + $0x30] sm:$0xff]
        %v836 = vld [vmem:[%s237 + $0x38] sm:$0xff]
        %v837 = vld [vmem:[%s237 + $0x40] sm:$0xff]
        %v838 = vld [vmem:[%s237 + $0x48] sm:$0xff]
        %v839 = vld [vmem:[%s237 + $0x50] sm:$0xff]
        %v840 = vld [vmem:[%s237 + $0x58] sm:$0xff]
        %v841 = vld [vmem:[%s237 + $0x60] sm:$0xff]
        %v842 = vld [vmem:[%s237 + $0x68] sm:$0xff]
        %v843 = vld [vmem:[%s237 + $0x70] sm:$0xff]
        %v844 = vld [vmem:[%s237 + $0x78] sm:$0xff]
        %v845 = vmul.f32 %v829, %v813
        %v846 = vmul.f32 %v830, %v814
        %v847 = vmul.f32 %v831, %v815
        %v848 = vmul.f32 %v832, %v816
        %v849 = vmul.f32 %v833, %v817
        %v850 = vmul.f32 %v834, %v818
        %v851 = vmul.f32 %v835, %v819
        %v852 = vmul.f32 %v836, %v820
        %v853 = vmul.f32 %v837, %v821
        %v854 = vmul.f32 %v838, %v822
        %v855 = vmul.f32 %v839, %v823
        %v856 = vmul.f32 %v840, %v824
        %v857 = vmul.f32 %v841, %v825
        %v858 = vmul.f32 %v842, %v826
        %v859 = vmul.f32 %v843, %v827
        %v860 = vmul.f32 %v844, %v828
        %v861 = vld [vmem:[%s243] sm:$0xff]
        %v862 = vld [vmem:[%s243 + $0x8] sm:$0xff]
        %v863 = vld [vmem:[%s243 + $0x10] sm:$0xff]
        %v864 = vld [vmem:[%s243 + $0x18] sm:$0xff]
        %v865 = vld [vmem:[%s243 + $0x20] sm:$0xff]
        %v866 = vld [vmem:[%s243 + $0x28] sm:$0xff]
        %v867 = vld [vmem:[%s243 + $0x30] sm:$0xff]
        %v868 = vld [vmem:[%s243 + $0x38] sm:$0xff]
        %v869 = vld [vmem:[%s243 + $0x40] sm:$0xff]
        %v870 = vld [vmem:[%s243 + $0x48] sm:$0xff]
        %v871 = vld [vmem:[%s243 + $0x50] sm:$0xff]
        %v872 = vld [vmem:[%s243 + $0x58] sm:$0xff]
        %v873 = vld [vmem:[%s243 + $0x60] sm:$0xff]
        %v874 = vld [vmem:[%s243 + $0x68] sm:$0xff]
        %v875 = vld [vmem:[%s243 + $0x70] sm:$0xff]
        %v876 = vld [vmem:[%s243 + $0x78] sm:$0xff]
        %v877 = vmul.f32 %v733, %v845
        %v878 = vmul.f32 %v734, %v846
        %v879 = vmul.f32 %v735, %v847
        %v880 = vmul.f32 %v736, %v848
        %v881 = vmul.f32 %v737, %v849
        %v882 = vmul.f32 %v738, %v850
        %v883 = vmul.f32 %v739, %v851
        %v884 = vmul.f32 %v740, %v852
        %v885 = vmul.f32 %v741, %v853
        %v886 = vmul.f32 %v742, %v854
        %v887 = vmul.f32 %v743, %v855
        %v888 = vmul.f32 %v744, %v856
        %v889 = vmul.f32 %v745, %v857
        %v890 = vmul.f32 %v746, %v858
        %v891 = vmul.f32 %v747, %v859
        %v892 = vmul.f32 %v748, %v860
        %v893 = vsub.f32 %v861, %v877
        %v894 = vsub.f32 %v862, %v878
        %v895 = vsub.f32 %v863, %v879
        %v896 = vsub.f32 %v864, %v880
        %v897 = vsub.f32 %v865, %v881
        %v898 = vsub.f32 %v866, %v882
        %v899 = vsub.f32 %v867, %v883
        %v900 = vsub.f32 %v868, %v884
        %v901 = vsub.f32 %v869, %v885
        %v902 = vsub.f32 %v870, %v886
        %v903 = vsub.f32 %v871, %v887
        %v904 = vsub.f32 %v872, %v888
        %v905 = vsub.f32 %v873, %v889
        %v906 = vsub.f32 %v874, %v890
        %v907 = vsub.f32 %v875, %v891
        %v908 = vsub.f32 %v876, %v892
        %910 = vset.pattern.permute.xlu0 0
        %911 = vperm.xlu0 %910, %v845
        %v912 = vpop.permute.xlu0 %911
        %915 = vset.pattern.permute.xlu0 0
        %916 = vperm.xlu0 %915, %v846
        %v917 = vpop.permute.xlu0 %916
        %920 = vset.pattern.permute.xlu0 0
        %921 = vperm.xlu0 %920, %v847
        %v922 = vpop.permute.xlu0 %921
        %925 = vset.pattern.permute.xlu0 0
        %926 = vperm.xlu0 %925, %v848
        %v927 = vpop.permute.xlu0 %926
        %930 = vset.pattern.permute.xlu0 0
        %931 = vperm.xlu0 %930, %v849
        %v932 = vpop.permute.xlu0 %931
        %935 = vset.pattern.permute.xlu0 0
        %936 = vperm.xlu0 %935, %v850
        %v937 = vpop.permute.xlu0 %936
        %940 = vset.pattern.permute.xlu0 0
        %941 = vperm.xlu0 %940, %v851
        %v942 = vpop.permute.xlu0 %941
        %945 = vset.pattern.permute.xlu0 0
        %946 = vperm.xlu0 %945, %v852
        %v947 = vpop.permute.xlu0 %946
        %950 = vset.pattern.permute.xlu0 0
        %951 = vperm.xlu0 %950, %v853
        %v952 = vpop.permute.xlu0 %951
        %955 = vset.pattern.permute.xlu0 0
        %956 = vperm.xlu0 %955, %v854
        %v957 = vpop.permute.xlu0 %956
        %960 = vset.pattern.permute.xlu0 0
        %961 = vperm.xlu0 %960, %v855
        %v962 = vpop.permute.xlu0 %961
        %965 = vset.pattern.permute.xlu0 0
        %966 = vperm.xlu0 %965, %v856
        %v967 = vpop.permute.xlu0 %966
        %970 = vset.pattern.permute.xlu0 0
        %971 = vperm.xlu0 %970, %v857
        %v972 = vpop.permute.xlu0 %971
        %975 = vset.pattern.permute.xlu0 0
        %976 = vperm.xlu0 %975, %v858
        %v977 = vpop.permute.xlu0 %976
        %980 = vset.pattern.permute.xlu0 0
        %981 = vperm.xlu0 %980, %v859
        %v982 = vpop.permute.xlu0 %981
        %985 = vset.pattern.permute.xlu0 0
        %986 = vperm.xlu0 %985, %v860
        %v987 = vpop.permute.xlu0 %986
        %v989 = vmul.f32 %v527, %v912
        %v990 = vmul.f32 %v529, %v912
        %v991 = vmul.f32 %v531, %v917
        %v992 = vmul.f32 %v533, %v917
        %v993 = vmul.f32 %v537, %v922
        %v994 = vmul.f32 %v539, %v922
        %v995 = vmul.f32 %v541, %v927
        %v996 = vmul.f32 %v543, %v927
        %v997 = vmul.f32 %v547, %v932
        %v998 = vmul.f32 %v549, %v932
        %v999 = vmul.f32 %v551, %v937
        %v1000 = vmul.f32 %v553, %v937
        %v1001 = vmul.f32 %v557, %v942
        %v1002 = vmul.f32 %v559, %v942
        %v1003 = vmul.f32 %v561, %v947
        %v1004 = vmul.f32 %v563, %v947
        %v1005 = vmul.f32 %v567, %v952
        %v1006 = vmul.f32 %v569, %v952
        %v1007 = vmul.f32 %v571, %v957
        %v1008 = vmul.f32 %v573, %v957
        %v1009 = vmul.f32 %v577, %v962
        %v1010 = vmul.f32 %v579, %v962
        %v1011 = vmul.f32 %v581, %v967
        %v1012 = vmul.f32 %v583, %v967
        %v1013 = vmul.f32 %v587, %v972
        %v1014 = vmul.f32 %v589, %v972
        %v1015 = vmul.f32 %v591, %v977
        %v1016 = vmul.f32 %v593, %v977
        %v1017 = vmul.f32 %v597, %v982
        %v1018 = vmul.f32 %v599, %v982
        %v1019 = vmul.f32 %v601, %v987
        %v1020 = vmul.f32 %v603, %v987
        %1022 = vset.pattern.permute.xlu0 0
        %1023 = vperm.xlu0 %1022, %v893
        %v1024 = vpop.permute.xlu0 %1023
        %1027 = vset.pattern.permute.xlu0 0
        %1028 = vperm.xlu0 %1027, %v894
        %v1029 = vpop.permute.xlu0 %1028
        %1032 = vset.pattern.permute.xlu0 0
        %1033 = vperm.xlu0 %1032, %v895
        %v1034 = vpop.permute.xlu0 %1033
        %1037 = vset.pattern.permute.xlu0 0
        %1038 = vperm.xlu0 %1037, %v896
        %v1039 = vpop.permute.xlu0 %1038
        %1042 = vset.pattern.permute.xlu0 0
        %1043 = vperm.xlu0 %1042, %v897
        %v1044 = vpop.permute.xlu0 %1043
        %1047 = vset.pattern.permute.xlu0 0
        %1048 = vperm.xlu0 %1047, %v898
        %v1049 = vpop.permute.xlu0 %1048
        %1052 = vset.pattern.permute.xlu0 0
        %1053 = vperm.xlu0 %1052, %v899
        %v1054 = vpop.permute.xlu0 %1053
        %1057 = vset.pattern.permute.xlu0 0
        %1058 = vperm.xlu0 %1057, %v900
        %v1059 = vpop.permute.xlu0 %1058
        %1062 = vset.pattern.permute.xlu0 0
        %1063 = vperm.xlu0 %1062, %v901
        %v1064 = vpop.permute.xlu0 %1063
        %1067 = vset.pattern.permute.xlu0 0
        %1068 = vperm.xlu0 %1067, %v902
        %v1069 = vpop.permute.xlu0 %1068
        %1072 = vset.pattern.permute.xlu0 0
        %1073 = vperm.xlu0 %1072, %v903
        %v1074 = vpop.permute.xlu0 %1073
        %1077 = vset.pattern.permute.xlu0 0
        %1078 = vperm.xlu0 %1077, %v904
        %v1079 = vpop.permute.xlu0 %1078
        %1082 = vset.pattern.permute.xlu0 0
        %1083 = vperm.xlu0 %1082, %v905
        %v1084 = vpop.permute.xlu0 %1083
        %1087 = vset.pattern.permute.xlu0 0
        %1088 = vperm.xlu0 %1087, %v906
        %v1089 = vpop.permute.xlu0 %1088
        %1092 = vset.pattern.permute.xlu0 0
        %1093 = vperm.xlu0 %1092, %v907
        %v1094 = vpop.permute.xlu0 %1093
        %1097 = vset.pattern.permute.xlu0 0
        %1098 = vperm.xlu0 %1097, %v908
        %v1099 = vpop.permute.xlu0 %1098
        %v1101 = vadd.f32 %v989, %v1024
        %v1102 = vadd.f32 %v990, %v1024
        %v1103 = vadd.f32 %v991, %v1029
        %v1104 = vadd.f32 %v992, %v1029
        %v1105 = vadd.f32 %v993, %v1034
        %v1106 = vadd.f32 %v994, %v1034
        %v1107 = vadd.f32 %v995, %v1039
        %v1108 = vadd.f32 %v996, %v1039
        %v1109 = vadd.f32 %v997, %v1044
        %v1110 = vadd.f32 %v998, %v1044
        %v1111 = vadd.f32 %v999, %v1049
        %v1112 = vadd.f32 %v1000, %v1049
        %v1113 = vadd.f32 %v1001, %v1054
        %v1114 = vadd.f32 %v1002, %v1054
        %v1115 = vadd.f32 %v1003, %v1059
        %v1116 = vadd.f32 %v1004, %v1059
        %v1117 = vadd.f32 %v1005, %v1064
        %v1118 = vadd.f32 %v1006, %v1064
        %v1119 = vadd.f32 %v1007, %v1069
        %v1120 = vadd.f32 %v1008, %v1069
        %v1121 = vadd.f32 %v1009, %v1074
        %v1122 = vadd.f32 %v1010, %v1074
        %v1123 = vadd.f32 %v1011, %v1079
        %v1124 = vadd.f32 %v1012, %v1079
        %v1125 = vadd.f32 %v1013, %v1084
        %v1126 = vadd.f32 %v1014, %v1084
        %v1127 = vadd.f32 %v1015, %v1089
        %v1128 = vadd.f32 %v1016, %v1089
        %v1129 = vadd.f32 %v1017, %v1094
        %v1130 = vadd.f32 %v1018, %v1094
        %v1131 = vadd.f32 %v1019, %v1099
        %v1132 = vadd.f32 %v1020, %v1099
        %1133 = vst [vmem:[%s225] sm:$0xff] %v1101
        %1134 = vst [vmem:[%s225 + $0x8] sm:$0xff] %v1102
        %1135 = vst [vmem:[%s225 + $0x10] sm:$0xff] %v1103
        %1136 = vst [vmem:[%s225 + $0x18] sm:$0xff] %v1104
        %1137 = vst [vmem:[%s225 + $0x20] sm:$0xff] %v1105
        %1138 = vst [vmem:[%s225 + $0x28] sm:$0xff] %v1106
        %1139 = vst [vmem:[%s225 + $0x30] sm:$0xff] %v1107
        %1140 = vst [vmem:[%s225 + $0x38] sm:$0xff] %v1108
        %1141 = vst [vmem:[%s225 + $0x40] sm:$0xff] %v1109
        %1142 = vst [vmem:[%s225 + $0x48] sm:$0xff] %v1110
        %1143 = vst [vmem:[%s225 + $0x50] sm:$0xff] %v1111
        %1144 = vst [vmem:[%s225 + $0x58] sm:$0xff] %v1112
        %1145 = vst [vmem:[%s225 + $0x60] sm:$0xff] %v1113
        %1146 = vst [vmem:[%s225 + $0x68] sm:$0xff] %v1114
        %1147 = vst [vmem:[%s225 + $0x70] sm:$0xff] %v1115
        %1148 = vst [vmem:[%s225 + $0x78] sm:$0xff] %v1116
        %1149 = vst [vmem:[%s225 + $0x80] sm:$0xff] %v1117
        %1150 = vst [vmem:[%s225 + $0x88] sm:$0xff] %v1118
        %1151 = vst [vmem:[%s225 + $0x90] sm:$0xff] %v1119
        %1152 = vst [vmem:[%s225 + $0x98] sm:$0xff] %v1120
        %1153 = vst [vmem:[%s225 + $0xa0] sm:$0xff] %v1121
        %1154 = vst [vmem:[%s225 + $0xa8] sm:$0xff] %v1122
        %1155 = vst [vmem:[%s225 + $0xb0] sm:$0xff] %v1123
        %1156 = vst [vmem:[%s225 + $0xb8] sm:$0xff] %v1124
        %1157 = vst [vmem:[%s225 + $0xc0] sm:$0xff] %v1125
        %1158 = vst [vmem:[%s225 + $0xc8] sm:$0xff] %v1126
        %1159 = vst [vmem:[%s225 + $0xd0] sm:$0xff] %v1127
        %1160 = vst [vmem:[%s225 + $0xd8] sm:$0xff] %v1128
        %1161 = vst [vmem:[%s225 + $0xe0] sm:$0xff] %v1129
        %1162 = vst [vmem:[%s225 + $0xe8] sm:$0xff] %v1130
        %1163 = vst [vmem:[%s225 + $0xf0] sm:$0xff] %v1131
        %1164 = vst [vmem:[%s225 + $0xf8] sm:$0xff] %v1132
        %s1165 = sand.u32 %s125, 1
        %s1166 = scalar_lea.sflag [#allocation3], %s1165
        %s1167 = sand.u32 %s125, 1
        %s1168 = smul.addr %s1167, 256
        %s1169 = scalar_lea.vmem [#allocation2], %s1168
        // Predicated region
        $region37: #{tpu_custom_call.1} parent=35 // pred_check
          %p1170 = pneg %p135
        $region38: #{tpu_custom_call.1} parent=35 // pred_check_branch
          %1172 = sbr.rel (%p1170) target = $region40
        $region39: #{tpu_custom_call.1} parent=35 // pred_region
          %s1173 = smul.u32 16, %s18
          %s1175 = ssub.s32 4096, 4096
          %1176 = vsyncadd %s1166, %s1175
          %s1177 = smul.addr %s1173, 2
          %s1178 = smul.addr %s1177, 128
          %s1179 = scalar_lea.hbm %s4, %s1178
          %s1180 = sshll.u32 %s1169, 4
          %s1181 = int_to_ptr.vmem [resolvable:$true] %s1180
          %1186 = dma.vmem_to_hbm [thread:$0]  %s1181, 4096, %s1179, %s1166, 256, 256, 16
        $region40: #{tpu_custom_call.1} parent=35 // pred_fallthru
          _
      $region36: #{tpu_custom_call.1} parent=5 // pred_fallthru
        _
      %p1187 = scmp.le.s32.totalorder 2, %s13
      // Predicated region
      $region41: #{tpu_custom_call.1} parent=5 // pred_check
        %p1188 = pneg %p1187
      $region42: #{tpu_custom_call.1} parent=5 // pred_check_branch
        %1190 = sbr.rel (%p1188) target = $region44
      $region43: #{tpu_custom_call.1} parent=5 // pred_region
        %s1191 = ssub.s32 %s13, 2
        // Predicated region
        $region45: #{tpu_custom_call.1} parent=43 // pred_check
          %p1192 = pneg %p141
        $region46: #{tpu_custom_call.1} parent=43 // pred_check_branch
          %1194 = sbr.rel (%p1192) target = $region48
        $region47: #{tpu_custom_call.1} parent=43 // pred_region
          %s1195 = sand.u32 %s126, 1
          %s1196 = scalar_lea.sflag [#allocation3], %s1195
          %s1197 = sand.u32 %s126, 1
          %s1198 = smul.addr %s1197, 256
          %s1199 = scalar_lea.vmem [#allocation2], %s1198
          %1200 = dma.done %s1196, 4096
        $region48: #{tpu_custom_call.1} parent=43 // pred_fallthru
          _
      $region44: #{tpu_custom_call.1} parent=5 // pred_fallthru
        _
    $region6: #{tpu_custom_call.1} parent=1 // loop_footer
      %s17 = sadd.s32 1, %s13
    $region7: #{tpu_custom_call.1} parent=1 // loop_footer_branch
      %12 = sbr.rel target = $region3
    $region8: #{tpu_custom_call.1} parent=1 // loop_exit
      _
    %1201 = vsyncpa [#allocation3], 1
    %s1202 = scalar_lea.sflag [#allocation3], 1
    %1203 = vsyncpa %s1202, 1

</llo_original>
